<compile_context>
chip_gen: v7x
topology: tpu7x:2x2x1
jax: 0.10.0
libtpu: 0.0.40
codegen_flags: <defaults>
</compile_context>

<pallas_src>
import functools
import math

import jax
import jax.numpy as jnp
from jax.experimental import pallas as pl
from jax.experimental.pallas import tpu as pltpu

_MiB = 1024 * 1024
# Per-grid-step VMEM working-set budget: fits v7x (64 MiB physical / 32 MiB default
# scoped) with headroom while already streaming multi-MB per step on v5e/v6e.
_VMEM_STEP_BUDGET = 12 * _MiB


def _cdiv(a, b):
    return -(-a // b)


def _round_up(x, m):
    return _cdiv(x, m) * m


def _lcm(a, b):
    return a * b // math.gcd(a, b)


def _vmem_limit_bytes(working_set_bytes):
    # 2x headroom for compiler temporaries; floor 32 MiB (raises v5e's 16 MiB
    # default), cap 48 MiB (stays well under v7x's 64 MiB physical VMEM).
    return int(min(max(2 * working_set_bytes, 32 * _MiB), 48 * _MiB))


# ----------------------------- kernels --------------------------------------

def _conv1x1_relu_kernel(x_ref, w_ref, b_ref, o_ref):
    # x_ref: (1, Cin, L)   w_ref: (Cout, Cin)   b_ref: (Cout, 1)   o_ref: (1, Cout, L)
    y = jnp.dot(w_ref[...], x_ref[0],
                preferred_element_type=jnp.float32,
                precision=jax.lax.Precision.HIGHEST)
    o_ref[0] = jnp.maximum(y + b_ref[...], 0.0).astype(o_ref.dtype)


def _conv1x1_relu_pool2_kernel(x_ref, w_ref, b_ref, p_ref, o_ref, *, pr, w_in):
    # x_ref: (1, Cin, pr*2*w_in)  -- pr row-pairs of the image, row-major flattened.
    # w_ref: (Cout, Cin)          -- 1x1 conv weight.
    # b_ref: (Cout, 1)            -- bias.
    # p_ref: (w_in, w_in//2)      -- horizontal 2x avg-pool matrix (0.25 entries).
    # o_ref: (1, Cout, pr*(w_in//2))
    y = jnp.dot(w_ref[...], x_ref[0],
                preferred_element_type=jnp.float32,
                precision=jax.lax.Precision.HIGHEST)
    y = jnp.maximum(y + b_ref[...], 0.0)              # (Cout, pr*2*w_in) f32, in VMEM

    pieces = []
    for p in range(pr):                               # static unroll; pr kept small
        seg = y[:, p * 2 * w_in:(p + 1) * 2 * w_in]   # one row-pair (Cout, 2*w_in)
        rows = seg[:, :w_in] + seg[:, w_in:]          # vertical pair-sum (Cout, w_in)
        pieces.append(jnp.dot(rows, p_ref[...],
                              preferred_element_type=jnp.float32,
                              precision=jax.lax.Precision.HIGHEST))
    pooled = pieces[0] if pr == 1 else jnp.concatenate(pieces, axis=-1)
    # Single lane-dense store per block (no per-pair masked partial stores).
    o_ref[0] = pooled.astype(o_ref.dtype)


# ----------------------------- wrappers -------------------------------------

def conv1x1_relu(x_nchw, w, b, *, vmem_budget_bytes=_VMEM_STEP_BUDGET):
    """x: (N, Cin, H, W), w: (Cout, Cin), b: (Cout,) -> (N, Cout, H, W)."""
    N, Cin, H, W = x_nchw.shape
    Cout = w.shape[0]
    hw = H * W
    itemsize = jnp.dtype(x_nchw.dtype).itemsize
    cin_p, cout_p = _round_up(Cin, 8), _round_up(Cout, 8)
    x = x_nchw.reshape(N, Cin, hw)                    # free reshape (contiguous NCHW)

    # VMEM bytes per output lane per step: double-buffered x + out blocks + f32 y.
    per_lane = (2 * cin_p + 2 * cout_p) * itemsize + cout_p * 4
    tl_cap = max(128, (vmem_budget_bytes // per_lane) // 128 * 128)

    want_steps = max(1, _cdiv(4, N))                  # keep >=~4 steps for v7x's 2 TCs
    nchunks = max(_cdiv(hw, tl_cap), min(want_steps, _cdiv(hw, 128)))
    if nchunks <= 1:
        tl = hw                                       # full extent: always shape-legal
    else:
        tl = _round_up(_cdiv(hw, nchunks), 128)       # evened-out 128-multiple tiles
    grid = (N, _cdiv(hw, tl))

    ws = per_lane * tl + cout_p * (cin_p + 128) * itemsize + (64 << 10)

    y = pl.pallas_call(
        _conv1x1_relu_kernel,
        out_shape=jax.ShapeDtypeStruct((N, Cout, hw), x.dtype),
        grid_spec=pltpu.PrefetchScalarGridSpec(
            num_scalar_prefetch=0,
            grid=grid,
            in_specs=[
                pl.BlockSpec((1, Cin, tl), lambda n, j: (n, 0, j)),
                pl.BlockSpec((Cout, Cin), lambda n, j: (0, 0)),   # VMEM-resident
                pl.BlockSpec((Cout, 1), lambda n, j: (0, 0)),
            ],
            out_specs=pl.BlockSpec((1, Cout, tl), lambda n, j: (n, 0, j)),
        ),
        compiler_params=pltpu.CompilerParams(
            dimension_semantics=("parallel", "parallel"),
            vmem_limit_bytes=_vmem_limit_bytes(ws)),
    )(x, w, b.reshape(Cout, 1))
    return y.reshape(N, Cout, H, W)                   # free reshape


def _choose_row_pairs(ho, w_in, per_pair_bytes, fixed_bytes, vmem_budget, n_batch,
                      max_unroll=32):
    """Pick how many 2-row pairs each block covers, or None to request W-padding.

    Lane legality: block lane widths pr*2*W (input) and pr*(W//2) (output) must be
    128-multiples, unless the block spans the whole image (pr == Ho), in which case
    they equal the full flattened dims.  pr is also bounded by the VMEM budget and
    a small unroll cap, so blocks can never blow VMEM.
    """
    wo = max(w_in // 2, 1)
    pr_min = _lcm(128 // math.gcd(2 * w_in, 128), 128 // math.gcd(wo, 128))
    budget_pairs = max(1, (vmem_budget - fixed_bytes) // per_pair_bytes)
    if pr_min > ho or pr_min > max_unroll:
        # Only a whole-image block is lane-legal at this width.
        if ho <= max_unroll and ho <= budget_pairs:
            return ho                        # small image: one block per batch element
        return None                          # caller zero-pads W to a 128-multiple
    want_steps = max(1, _cdiv(4, max(1, n_batch)))    # feed both v7x TensorCores
    pr_cap = min(ho, max_unroll,
                 max(pr_min, budget_pairs),
                 max(pr_min, _cdiv(ho, want_steps)))
    return max(pr_min, (pr_cap // pr_min) * pr_min)


def conv1x1_relu_pool2(x_nchw, w, b, *, vmem_budget_bytes=_VMEM_STEP_BUDGET,
                       max_unroll=32):
    """Fused 1x1 conv + bias + ReLU + AvgPool2d(2). Returns (N, Cout, H//2, W//2)."""
    N, Cin, H, W = x_nchw.shape
    Cout = w.shape[0]
    # AvgPool2d(2) drops a trailing odd row/col; 1x1 conv commutes with cropping.
    He, We = (H // 2) * 2, (W // 2) * 2
    if (He, We) != (H, W):
        x_nchw = x_nchw[:, :, :He, :We]
        H, W = He, We
    Ho, Wo_true = H // 2, W // 2

    itemsize = jnp.dtype(x_nchw.dtype).itemsize
    cin_p, cout_p = _round_up(Cin, 8), _round_up(Cout, 8)

    def plan(width):
        wo = width // 2
        # Per-row-pair working set: double-buffered x + out blocks, f32 conv
        # intermediate and f32 pooled pieces.
        per_pair = ((2 * cin_p * 2 * width + 2 * cout_p * wo) * itemsize
                    + cout_p * (2 * width + wo) * 4)
        fixed = width * wo * 4 + cout_p * (cin_p + 128) * itemsize + (64 << 10)
        pr = _choose_row_pairs(Ho, width, per_pair, fixed, vmem_budget_bytes, N,
                               max_unroll)
        return pr, per_pair, fixed

    pr, per_pair, fixed = plan(W)
    padded = False
    if pr is None:
        # Awkward width: zero-pad W to a 128-multiple so small, lane-legal row-pair
        # blocks exist (one extra HBM pass over x; conv/pool of the pad is cropped).
        W = _round_up(W, 128)
        x_nchw = jnp.pad(x_nchw,
                         ((0, 0), (0, 0), (0, 0), (0, W - x_nchw.shape[3])))
        padded = True
        pr, per_pair, fixed = plan(W)
        assert pr is not None
    Wo = W // 2

    x = x_nchw.reshape(N, Cin, H * W)                 # free reshape

    # Horizontal 2x average-pool matrix (folds the full 1/4 factor), kept f32.
    pool_mat = ((jnp.arange(W)[:, None] // 2 == jnp.arange(Wo)[None, :])
                .astype(jnp.float32) * 0.25)

    kernel = functools.partial(_conv1x1_relu_pool2_kernel, pr=pr, w_in=W)
    grid = (N, _cdiv(Ho, pr))
    ws = pr * per_pair + fixed

    y = pl.pallas_call(
        kernel,
        out_shape=jax.ShapeDtypeStruct((N, Cout, Ho * Wo), x.dtype),
        grid_spec=pltpu.PrefetchScalarGridSpec(
            num_scalar_prefetch=0,
            grid=grid,
            in_specs=[
                pl.BlockSpec((1, Cin, pr * 2 * W), lambda n, r: (n, 0, r)),
                pl.BlockSpec((Cout, Cin), lambda n, r: (0, 0)),
                pl.BlockSpec((Cout, 1), lambda n, r: (0, 0)),
                pl.BlockSpec((W, Wo), lambda n, r: (0, 0)),
            ],
            out_specs=pl.BlockSpec((1, Cout, pr * Wo), lambda n, r: (n, 0, r)),
        ),
        compiler_params=pltpu.CompilerParams(
            dimension_semantics=("parallel", "parallel"),
            vmem_limit_bytes=_vmem_limit_bytes(ws)),
    )(x, w, b.reshape(Cout, 1), pool_mat)

    out = y.reshape(N, Cout, Ho, Wo)                  # free reshape
    if padded:
        out = out[:, :, :, :Wo_true]
    return out


class CatRGBD:
    """JAX/Pallas port of Cat_rgbd: align = Conv2d(1x1, bias) + ReLU, optional AvgPool2d(2)."""

    def __init__(self, in_channels, out_channels, pooling=False, kernel_size=2,
                 key=jax.random.PRNGKey(0), dtype=jnp.float32):
        kw, kb = jax.random.split(key)
        bound = 1.0 / (in_channels ** 0.5)
        # Conv2d 1x1 weight (Cout, Cin, 1, 1) stored as (Cout, Cin).
        self.w = jax.random.uniform(kw, (out_channels, in_channels),
                                    minval=-bound, maxval=bound, dtype=dtype)
        self.b = jax.random.uniform(kb, (out_channels,),
                                    minval=-bound, maxval=bound, dtype=dtype)
        self.pooling = pooling
        self.kernel_size = kernel_size
        self.out_channels = out_channels

    def __call__(self, x_nchw):
        if self.pooling:
            assert self.kernel_size == 2, "fused pool implemented for kernel_size=2"
            return conv1x1_relu_pool2(x_nchw, self.w, self.b)
        return conv1x1_relu(x_nchw, self.w, self.b)


# ----------------------------- reference ------------------------------------

def _reference(x_nchw, w, b, pooling):
    N, Cin, H, W = x_nchw.shape
    y = jnp.einsum('nchw,oc->nohw', x_nchw, w) + b[None, :, None, None]
    y = jnp.maximum(y, 0.0)
    if pooling:
        y = y.reshape(N, -1, H // 2, 2, W // 2, 2).mean(axis=(3, 5))
    return y


if __name__ == "__main__":
    key = jax.random.PRNGKey(0)
    kx, kp = jax.random.split(key)

    N, Cin, H, W = 2, 4, 16, 16
    Cout = 8
    x = jax.random.normal(kx, (N, Cin, H, W), dtype=jnp.float32)

    ok = True
    for pooling in (False, True):
        mod = CatRGBD(Cin, Cout, pooling=pooling, kernel_size=2, key=kp)
        out = jax.block_until_ready(mod(x))
        ref = _reference(x, mod.w, mod.b, pooling)
        expected_shape = (N, Cout, H // 2, W // 2) if pooling else (N, Cout, H, W)
        if out.shape != expected_shape:
            ok = False
        if not jnp.allclose(out, ref, atol=1e-5, rtol=1e-5):
            ok = False

    if ok:
        print("KERNEL_OK")
    else:
        print("MISMATCH")
</pallas_src>

<mosaic_0001>
module attributes {stable_mosaic.version = 11 : i64} {
  func.func @_conv1x1_relu_kernel(%arg0: i32, %arg1: i32, %arg2: memref<1x4x128xf32, #tpu.memory_space<vmem>>, %arg3: memref<8x4xf32, #tpu.memory_space<vmem>>, %arg4: memref<8x1xf32, #tpu.memory_space<vmem>>, %arg5: memref<1x8x128xf32, #tpu.memory_space<vmem>>) attributes {dimension_semantics = [#tpu.dimension_semantics<parallel>, #tpu.dimension_semantics<parallel>], iteration_bounds = array<i64: 2, 2>, scalar_prefetch = 0 : i64, scratch_operands = 0 : i64, tpu.core_type = #tpu.core_type<tc>, window_params = [{transform_indices = @transform_0, window_bounds = array<i64: 1, 4, 128>}, {pipeline_mode = #tpu.pipeline_mode<synchronous>, transform_indices = @transform_1, window_bounds = array<i64: 8, 4>}, {pipeline_mode = #tpu.pipeline_mode<synchronous>, transform_indices = @transform_2, window_bounds = array<i64: 8, 1>}, {transform_indices = @transform_3, window_bounds = array<i64: 1, 8, 128>}]} {
    %c0 = arith.constant 0 : index
    %c0_0 = arith.constant 0 : index
    %0 = vector.load %arg3[%c0, %c0_0] : memref<8x4xf32, #tpu.memory_space<vmem>>, vector<8x4xf32>
    %c0_1 = arith.constant 0 : index
    %c0_2 = arith.constant 0 : index
    %c0_3 = arith.constant 0 : index
    %1 = vector.load %arg2[%c0_1, %c0_2, %c0_3] : memref<1x4x128xf32, #tpu.memory_space<vmem>>, vector<1x4x128xf32>
    %2 = vector.shape_cast %1 : vector<1x4x128xf32> to vector<4x128xf32>
    %cst = arith.constant dense<0.000000e+00> : vector<8x128xf32>
    %3 = tpu.matmul %0, %2, %cst {dimension_numbers = #tpu.dot_dimension_numbers<[1], [0], [0], [1], [0, 0, 1, 1], [], []>, precision = #tpu.contract_precision<fp32>} : vector<8x4xf32>, vector<4x128xf32>, vector<8x128xf32> -> vector<8x128xf32>
    %c0_4 = arith.constant 0 : index
    %c0_5 = arith.constant 0 : index
    %4 = vector.load %arg4[%c0_4, %c0_5] : memref<8x1xf32, #tpu.memory_space<vmem>>, vector<8x1xf32>
    %5 = vector.broadcast %4 : vector<8x1xf32> to vector<8x128xf32>
    %6 = arith.addf %3, %5 : vector<8x128xf32>
    %cst_6 = arith.constant 0.000000e+00 : f32
    %7 = vector.broadcast %cst_6 : f32 to vector<8x128xf32>
    %8 = arith.maximumf %6, %7 : vector<8x128xf32>
    %c0_7 = arith.constant 0 : index
    %c0_8 = arith.constant 0 : index
    %c0_9 = arith.constant 0 : index
    %9 = vector.load %arg5[%c0_7, %c0_8, %c0_9] : memref<1x8x128xf32, #tpu.memory_space<vmem>>, vector<1x8x128xf32>
    %10 = vector.shape_cast %9 : vector<1x8x128xf32> to vector<8x128xf32>
    %11 = vector.shape_cast %8 : vector<8x128xf32> to vector<1x8x128xf32>
    tpu.vector_store %arg5[%c0_7, %c0_8, %c0_9], %11 {strides = array<i32>} : memref<1x8x128xf32, #tpu.memory_space<vmem>>, vector<1x8x128xf32>,
    return
  }
  func.func @transform_0(%arg0: i32, %arg1: i32) -> (i32, i32, i32) {
    %c0_i32 = arith.constant 0 : i32
    %c0_i32_0 = arith.constant 0 : i32
    return %arg0, %c0_i32, %arg1 : i32, i32, i32
  }
  func.func @transform_1(%arg0: i32, %arg1: i32) -> (i32, i32) {
    %c0_i32 = arith.constant 0 : i32
    %c0_i32_0 = arith.constant 0 : i32
    %c0_i32_1 = arith.constant 0 : i32
    return %c0_i32, %c0_i32_0 : i32, i32
  }
  func.func @transform_2(%arg0: i32, %arg1: i32) -> (i32, i32) {
    %c0_i32 = arith.constant 0 : i32
    %c0_i32_0 = arith.constant 0 : i32
    %c0_i32_1 = arith.constant 0 : i32
    return %c0_i32, %c0_i32_0 : i32, i32
  }
  func.func @transform_3(%arg0: i32, %arg1: i32) -> (i32, i32, i32) {
    %c0_i32 = arith.constant 0 : i32
    %c0_i32_0 = arith.constant 0 : i32
    return %arg0, %c0_i32, %arg1 : i32, i32, i32
  }
}

</mosaic_0001>

<llo_original>
// kernel: tpu_custom_call.1
$region0: #{tpu_custom_call.1}
  #allocation0 [shape = 'u32[]', space=smem, size = 0x4, offset = 0x4, fixed_abs, tag = 'smem constant byte address 0x4 - core index']
  #allocation1 [shape = 'u32[144,128]{1,0:T(1,128)}', space=vmem, size = 0x12000, scoped, tag = 'internal scratch']
  %s0 = inlined_call_operand.vmem [shape: f32[2,4,256], index: 0, kind: input, shape index: {}]
  %s1 = inlined_call_operand.vmem [shape: f32[8,4], index: 1, kind: input, shape index: {}]
  %s2 = inlined_call_operand.vmem [shape: f32[8,1], index: 2, kind: input, shape index: {}]
  %s3 = inlined_call_operand.hbm [shape: f32[2,8,256], index: 3, kind: output, shape index: {}]
  %s4 = sld [smem:[#allocation0]]
  $region45: #{tpu_custom_call.1} parent=0
    _
  %s6 = ssub.s32 1, %s4
  %s7 = scalar_select 0, %s6, %s4
  $region1: #{tpu_custom_call.1} parent=0
    #allocation2 [shape = 'u8[8192]{0}', space=vmem, size = 0x2000, scoped, tag = 'output window, operand 0']
    #allocation3 [shape = 's32[2]{0}', space=sflag, size = 0x8, scoped, tag = 'scoped memory for tpu_custom_call.1']
    %8 = vsyncpa [#allocation3], 0
    %s9 = scalar_lea.sflag [#allocation3], 1
    %10 = vsyncpa %s9, 0
    loop: start=0, step=1, limit=6
    $region2: #{tpu_custom_call.1} parent=1 // loop_pre_header
      _
    $region3: #{tpu_custom_call.1} parent=1 // loop_header
      %s12 = sphi 0, %s16
      %p13 = scmp.ge.s32.totalorder %s12, 6
      %s19 = sphi 0, %s31
      %s20 = sphi 0, %s27
      %s21 = sphi 0, %s19
      %s22 = sphi 0, %s20
      %s23 = sphi 0, %s21
      %s24 = sphi 0, %s22
      %s36 = sphi 0, %s38
      %s39 = sphi 0, %s36
      %s40 = sphi 0, %s39
      %s56 = sphi 0, %s40
      %s60 = sphi 0, %s60
      %s62 = sphi 0, %s60
      %s63 = sphi 0, %s62
      %s77 = sphi 0, %s63
      %s81 = sphi 0, %s81
      %s83 = sphi 0, %s81
      %s84 = sphi 0, %s83
      %s98 = sphi 0, %s84
      %s106 = sphi 0, %s108
      %s109 = sphi 0, %s106
      %s110 = sphi 0, %s109
      %s126 = sphi 0, %s110
    $region4: #{tpu_custom_call.1} parent=1 // loop_header_branch
      %15 = sbr.rel (%p13) target = $region8
    $region5: #{tpu_custom_call.1} parent=1 // loop_body
      %s17 = ssub.s32 %s12, 1
      %s18 = ssub.s32 %s12, 2
      %s25 = sadd.s32 1, %s20
      %p26 = scmp.ge.s32.totalorder %s25, 2
      %s27 = scalar_select %p26, 0, %s25
      %s28 = sadd.s32 1, %s19
      %s29 = scalar_select %p26, %s28, %s19
      %p30 = scmp.ge.s32.totalorder %s29, 2
      %s31 = scalar_select %p30, 0, %s29
      %s32 = ssub.s32 %s19, %s31
      %s33 = ssub.s32 %s20, %s27
      %s34 = sor.u32 %s32, %s33
      %p35 = scmp.eq.s32.totalorder %s34, 0
      %s37 = sadd.s32 %s36, 1
      %s38 = scalar_select %p35, %s36, %s37
      %p41 = pneg %p35
      %p42 = scmp.eq.s32.totalorder %s12, 3
      %p43 = por %p41, %p42
      %p44 = scmp.ne.s32.totalorder %s36, %s39
      %p45 = scmp.eq.s32.totalorder %s12, 0
      %p46 = por %p44, %p45
      %p47 = scmp.ne.s32.totalorder %s36, %s39
      %p48 = scmp.eq.s32.totalorder %s17, 3
      %p49 = por %p47, %p48
      %p50 = scmp.ne.s32.totalorder %s39, %s40
      %p51 = scmp.eq.s32.totalorder %s17, 0
      %p52 = por %p50, %p51
      %p53 = scmp.ne.s32.totalorder %s39, %s40
      %p54 = scmp.eq.s32.totalorder %s18, 3
      %p55 = por %p53, %p54
      %p57 = scmp.ne.s32.totalorder %s40, %s56
      %p58 = scmp.eq.s32.totalorder %s18, 0
      %p59 = por %p57, %p58
      %s61 = sadd.s32 %s60, 1
      %p64 = scmp.eq.s32.totalorder %s12, 3
      %p65 = scmp.ne.s32.totalorder %s60, %s62
      %p66 = scmp.eq.s32.totalorder %s12, 0
      %p67 = por %p65, %p66
      %p68 = scmp.ne.s32.totalorder %s60, %s62
      %p69 = scmp.eq.s32.totalorder %s17, 3
      %p70 = por %p68, %p69
      %p71 = scmp.ne.s32.totalorder %s62, %s63
      %p72 = scmp.eq.s32.totalorder %s17, 0
      %p73 = por %p71, %p72
      %p74 = scmp.ne.s32.totalorder %s62, %s63
      %p75 = scmp.eq.s32.totalorder %s18, 3
      %p76 = por %p74, %p75
      %p78 = scmp.ne.s32.totalorder %s63, %s77
      %p79 = scmp.eq.s32.totalorder %s18, 0
      %p80 = por %p78, %p79
      %s82 = sadd.s32 %s81, 1
      %p85 = scmp.eq.s32.totalorder %s12, 3
      %p86 = scmp.ne.s32.totalorder %s81, %s83
      %p87 = scmp.eq.s32.totalorder %s12, 0
      %p88 = por %p86, %p87
      %p89 = scmp.ne.s32.totalorder %s81, %s83
      %p90 = scmp.eq.s32.totalorder %s17, 3
      %p91 = por %p89, %p90
      %p92 = scmp.ne.s32.totalorder %s83, %s84
      %p93 = scmp.eq.s32.totalorder %s17, 0
      %p94 = por %p92, %p93
      %p95 = scmp.ne.s32.totalorder %s83, %s84
      %p96 = scmp.eq.s32.totalorder %s18, 3
      %p97 = por %p95, %p96
      %p99 = scmp.ne.s32.totalorder %s84, %s98
      %p100 = scmp.eq.s32.totalorder %s18, 0
      %p101 = por %p99, %p100
      %s102 = ssub.s32 %s19, %s31
      %s103 = ssub.s32 %s20, %s27
      %s104 = sor.u32 %s102, %s103
      %p105 = scmp.eq.s32.totalorder %s104, 0
      %s107 = sadd.s32 %s106, 1
      %s108 = scalar_select %p105, %s106, %s107
      %p111 = pneg %p105
      %p112 = scmp.eq.s32.totalorder %s12, 3
      %p113 = por %p111, %p112
      %p114 = scmp.ne.s32.totalorder %s106, %s109
      %p115 = scmp.eq.s32.totalorder %s12, 0
      %p116 = por %p114, %p115
      %p117 = scmp.ne.s32.totalorder %s106, %s109
      %p118 = scmp.eq.s32.totalorder %s17, 3
      %p119 = por %p117, %p118
      %p120 = scmp.ne.s32.totalorder %s109, %s110
      %p121 = scmp.eq.s32.totalorder %s17, 0
      %p122 = por %p120, %p121
      %p123 = scmp.ne.s32.totalorder %s109, %s110
      %p124 = scmp.eq.s32.totalorder %s18, 3
      %p125 = por %p123, %p124
      %p127 = scmp.ne.s32.totalorder %s110, %s126
      %p128 = scmp.eq.s32.totalorder %s18, 0
      %p129 = por %p127, %p128
      %p130 = scmp.le.s32.totalorder 1, %s12
      %p131 = scmp.lt.s32.totalorder %s12, 5
      %p132 = pnand %p130, %p131
      %p133 = pneg %p132
      // Predicated region
      $region9: #{tpu_custom_call.1} parent=5 // pred_check
        _
      $region10: #{tpu_custom_call.1} parent=5 // pred_check_branch
        %135 = sbr.rel (%p132) target = $region12
      $region11: #{tpu_custom_call.1} parent=5 // pred_region
        %s136 = ssub.s32 %s12, 1
        // Predicated region
        $region13: #{tpu_custom_call.1} parent=11 // pred_check
          %p137 = pneg %p73
        $region14: #{tpu_custom_call.1} parent=11 // pred_check_branch
          %139 = sbr.rel (%p137) target = $region16
        $region15: #{tpu_custom_call.1} parent=11 // pred_region
          _
        $region16: #{tpu_custom_call.1} parent=11 // pred_fallthru
          _
        // Predicated region
        $region17: #{tpu_custom_call.1} parent=11 // pred_check
          %p140 = pneg %p94
        $region18: #{tpu_custom_call.1} parent=11 // pred_check_branch
          %142 = sbr.rel (%p140) target = $region20
        $region19: #{tpu_custom_call.1} parent=11 // pred_region
          _
        $region20: #{tpu_custom_call.1} parent=11 // pred_fallthru
          _
      $region12: #{tpu_custom_call.1} parent=5 // pred_fallthru
        _
      %p143 = scmp.lt.s32.totalorder %s12, 4
      // Predicated region
      $region21: #{tpu_custom_call.1} parent=5 // pred_check
        %p144 = pneg %p143
      $region22: #{tpu_custom_call.1} parent=5 // pred_check_branch
        %146 = sbr.rel (%p144) target = $region24
      $region23: #{tpu_custom_call.1} parent=5 // pred_region
        // Predicated region
        $region25: #{tpu_custom_call.1} parent=23 // pred_check
          %p147 = pneg %p46
        $region26: #{tpu_custom_call.1} parent=23 // pred_check_branch
          %149 = sbr.rel (%p147) target = $region28
        $region27: #{tpu_custom_call.1} parent=23 // pred_region
          %p150 = scmp.lt.s32.totalorder %s19, 1
          %s151 = scalar_select %p150, %s19, 1
          %p152 = scmp.lt.s32.totalorder %s20, 1
          %s153 = scalar_select %p152, %s20, 1
          %s154 = smul.addr %s151, 2
          %s155 = sadd.s32 %s153, %s154
          %s156 = smul.addr %s155, 4
          %s157 = scalar_lea.vmem %s0, %s156
        $region28: #{tpu_custom_call.1} parent=23 // pred_fallthru
          _
      $region24: #{tpu_custom_call.1} parent=5 // pred_fallthru
        _
      %p158 = scmp.le.s32.totalorder 1, %s12
      %p159 = scmp.lt.s32.totalorder %s12, 5
      %p160 = pnand %p158, %p159
      %p161 = pneg %p160
      // Predicated region
      $region29: #{tpu_custom_call.1} parent=5 // pred_check
        _
      $region30: #{tpu_custom_call.1} parent=5 // pred_check_branch
        %163 = sbr.rel (%p160) target = $region32
      $region31: #{tpu_custom_call.1} parent=5 // pred_region
        %s164 = ssub.s32 %s12, 1
        %p165 = scmp.lt.s32.totalorder %s21, 1
        %s166 = scalar_select %p165, %s21, 1
        %p167 = scmp.lt.s32.totalorder %s22, 1
        %s168 = scalar_select %p167, %s22, 1
        %s169 = smul.addr %s166, 2
        %s170 = sadd.s32 %s168, %s169
        %s171 = smul.addr %s170, 4
        %s172 = scalar_lea.vmem %s0, %s171
        %p173 = pneg %p52
        %p174 = pneg %p49
        %p175 = pneg %p73
        %p176 = pneg %p70
        %p177 = pneg %p94
        %p178 = pneg %p91
        %p179 = pneg %p122
        %p180 = pneg %p119
        %s181 = sand.u32 %s109, 1
        %s182 = scalar_lea.sflag [#allocation3], %s181
        %s183 = sand.u32 %s109, 1
        %s184 = smul.addr %s183, 8
        %s185 = scalar_lea.vmem [#allocation2], %s184
        %p186 = scmp.lt.s32.totalorder %s21, 1
        %s187 = scalar_select %p186, %s21, 1
        %p188 = scmp.lt.s32.totalorder %s22, 1
        %s189 = scalar_select %p188, %s22, 1
        %s190 = smul.addr %s187, 2
        %s191 = sadd.s32 %s189, %s190
        %s192 = smul.addr %s191, 4
        %s193 = scalar_lea.vmem %s0, %s192
        %v194 = vld [vmem:[%s1] sm:$0xff]
        %v195 = vld [vmem:[%s193] sm:$0xf]
        %v196 = vld [vmem:[%s2] sm:$0xff]
        %198 = vset.pattern.permute.xlu0 0
        %199 = vperm.xlu0 %198, %v196
        %v200 = vpop.permute.xlu0 %199
        %vm202 = vcmask 31744
        %v204 = vsel %vm202, %v194, 0
        %vm206 = vcmask 1043456
        %v208 = vsel %vm206, %v195, 0
        %210 = vmatprep.subr.mxu0 0.0
        %v211 = vand.u32 %v208, 4294901760
        %212 = vmatpush1.msra.mxu0 %v211
        %213 = vmatprep.subr.mxu0 0.0
        %214 = vmatpush1.msra.mxu0 0.0
        %215 = vmatprep.subr.mxu0 0.0
        %216 = vmatpush1.msra.mxu0 0.0
        %217 = vmatprep.subr.mxu0 0.0
        %218 = vmatpush1.msra.mxu0 0.0
        %219 = vmatprep.subr.mxu0 0.0
        %220 = vmatpush1.msra.mxu0 0.0
        %221 = vmatprep.subr.mxu0 0.0
        %222 = vmatpush1.msra.mxu0 0.0
        %223 = vmatprep.subr.mxu0 0.0
        %224 = vmatpush1.msra.mxu0 0.0
        %225 = vmatprep.subr.mxu0 0.0
        %226 = vmatpush1.msra.mxu0 0.0
        %227 = vmatprep.subr.mxu0 0.0
        %228 = vmatpush1.msra.mxu0 0.0
        %229 = vmatprep.subr.mxu0 0.0
        %230 = vmatpush1.msra.mxu0 0.0
        %231 = vmatprep.subr.mxu0 0.0
        %232 = vmatpush1.msra.mxu0 0.0
        %233 = vmatprep.subr.mxu0 0.0
        %234 = vmatpush1.msra.mxu0 0.0
        %235 = vmatprep.subr.mxu0 0.0
        %236 = vmatpush1.msra.mxu0 0.0
        %237 = vmatprep.subr.mxu0 0.0
        %238 = vmatpush1.msra.mxu0 0.0
        %239 = vmatprep.subr.mxu0 0.0
        %240 = vmatpush1.msra.mxu0 0.0
        %241 = vmatprep.subr.mxu0 0.0
        %242 = vmatpush1.msra.mxu0 0.0
        %243 = vmatprep.subr.mxu0 0.0
        %244 = vmatpush1.msra.mxu0 0.0
        %245 = vmatprep.subr.mxu0 0.0
        %246 = vmatpush1.msra.mxu0 0.0
        %247 = vmatprep.subr.mxu0 0.0
        %248 = vmatpush1.msra.mxu0 0.0
        %249 = vmatprep.subr.mxu0 0.0
        %250 = vmatpush1.msra.mxu0 0.0
        %251 = vmatprep.subr.mxu0 0.0
        %252 = vmatpush1.msra.mxu0 0.0
        %253 = vmatprep.subr.mxu0 0.0
        %254 = vmatpush1.msra.mxu0 0.0
        %255 = vmatprep.subr.mxu0 0.0
        %256 = vmatpush1.msra.mxu0 0.0
        %257 = vmatprep.subr.mxu0 0.0
        %258 = vmatpush1.msra.mxu0 0.0
        %259 = vmatprep.subr.mxu0 0.0
        %260 = vmatpush1.msra.mxu0 0.0
        %261 = vmatprep.subr.mxu0 0.0
        %262 = vmatpush1.msra.mxu0 0.0
        %263 = vmatprep.subr.mxu0 0.0
        %264 = vmatpush1.msra.mxu0 0.0
        %265 = vmatprep.subr.mxu0 0.0
        %266 = vmatpush1.msra.mxu0 0.0
        %267 = vmatprep.subr.mxu0 0.0
        %268 = vmatpush1.msra.mxu0 0.0
        %269 = vmatprep.subr.mxu0 0.0
        %270 = vmatpush1.msra.mxu0 0.0
        %271 = vmatprep.subr.mxu0 0.0
        %272 = vmatpush1.msra.mxu0 0.0
        %273 = vmatprep.subr.mxu0 0.0
        %274 = vmatpush1.msra.mxu0 0.0
        %275 = vmatprep.mubr.f32.mxu0 0.0
        %v276 = vand.u32 %v204, 4294901760
        %v277 = vsub.f32 %v204, %v276
        %v278 = vand.u32 %v277, 4294901760
        %v279 = vsub.f32 %v277, %v278
        %v280 = vand.u32 %v279, 4294901760
        %281 = vmatmul.mubr.f32.gmra.mrb[0].mxu0 %v280
        %v282 = vpop.f32.mrb[0].mxu0
        %v283 = vadd.f32 %v200, %v282
        %v284 = vpop.f32.mrb[0].mxu0
        %285 = vdwg.mxu0
        %286 = vmatprep.subr.mxu0 0.0
        %v287 = vand.u32 %v208, 4294901760
        %v288 = vsub.f32 %v208, %v287
        %v289 = vand.u32 %v288, 4294901760
        %v290 = vsub.f32 %v288, %v289
        %v291 = vand.u32 %v290, 4294901760
        %292 = vmatpush1.msra.mxu0 %v291
        %293 = vmatprep.subr.mxu0 0.0
        %294 = vmatpush1.msra.mxu0 0.0
        %295 = vmatprep.subr.mxu0 0.0
        %296 = vmatpush1.msra.mxu0 0.0
        %297 = vmatprep.subr.mxu0 0.0
        %298 = vmatpush1.msra.mxu0 0.0
        %299 = vmatprep.subr.mxu0 0.0
        %300 = vmatpush1.msra.mxu0 0.0
        %301 = vmatprep.subr.mxu0 0.0
        %302 = vmatpush1.msra.mxu0 0.0
        %303 = vmatprep.subr.mxu0 0.0
        %304 = vmatpush1.msra.mxu0 0.0
        %305 = vmatprep.subr.mxu0 0.0
        %306 = vmatpush1.msra.mxu0 0.0
        %307 = vmatprep.subr.mxu0 0.0
        %308 = vmatpush1.msra.mxu0 0.0
        %309 = vmatprep.subr.mxu0 0.0
        %310 = vmatpush1.msra.mxu0 0.0
        %311 = vmatprep.subr.mxu0 0.0
        %312 = vmatpush1.msra.mxu0 0.0
        %313 = vmatprep.subr.mxu0 0.0
        %314 = vmatpush1.msra.mxu0 0.0
        %315 = vmatprep.subr.mxu0 0.0
        %316 = vmatpush1.msra.mxu0 0.0
        %317 = vmatprep.subr.mxu0 0.0
        %318 = vmatpush1.msra.mxu0 0.0
        %319 = vmatprep.subr.mxu0 0.0
        %320 = vmatpush1.msra.mxu0 0.0
        %321 = vmatprep.subr.mxu0 0.0
        %322 = vmatpush1.msra.mxu0 0.0
        %323 = vmatprep.subr.mxu0 0.0
        %324 = vmatpush1.msra.mxu0 0.0
        %325 = vmatprep.subr.mxu0 0.0
        %326 = vmatpush1.msra.mxu0 0.0
        %327 = vmatprep.subr.mxu0 0.0
        %328 = vmatpush1.msra.mxu0 0.0
        %329 = vmatprep.subr.mxu0 0.0
        %330 = vmatpush1.msra.mxu0 0.0
        %331 = vmatprep.subr.mxu0 0.0
        %332 = vmatpush1.msra.mxu0 0.0
        %333 = vmatprep.subr.mxu0 0.0
        %334 = vmatpush1.msra.mxu0 0.0
        %335 = vmatprep.subr.mxu0 0.0
        %336 = vmatpush1.msra.mxu0 0.0
        %337 = vmatprep.subr.mxu0 0.0
        %338 = vmatpush1.msra.mxu0 0.0
        %339 = vmatprep.subr.mxu0 0.0
        %340 = vmatpush1.msra.mxu0 0.0
        %341 = vmatprep.subr.mxu0 0.0
        %342 = vmatpush1.msra.mxu0 0.0
        %343 = vmatprep.subr.mxu0 0.0
        %344 = vmatpush1.msra.mxu0 0.0
        %345 = vmatprep.subr.mxu0 0.0
        %346 = vmatpush1.msra.mxu0 0.0
        %347 = vmatprep.subr.mxu0 0.0
        %348 = vmatpush1.msra.mxu0 0.0
        %349 = vmatprep.subr.mxu0 0.0
        %350 = vmatpush1.msra.mxu0 0.0
        %351 = vmatprep.subr.mxu0 0.0
        %352 = vmatpush1.msra.mxu0 0.0
        %353 = vmatprep.subr.mxu0 0.0
        %354 = vmatpush1.msra.mxu0 0.0
        %355 = vmatprep.mubr.f32.mxu0 0.0
        %v356 = vand.u32 %v204, 4294901760
        %357 = vmatmul.mubr.f32.gmra.mrb[0].mxu0 %v356
        %v358 = vpop.f32.mrb[0].mxu0
        %v359 = vadd.f32 %v283, %v358
        %v360 = vpop.f32.mrb[0].mxu0
        %361 = vdwg.mxu0
        %362 = vmatprep.subr.mxu0 0.0
        %v363 = vand.u32 %v208, 4294901760
        %v364 = vsub.f32 %v208, %v363
        %365 = vmatpush1.msra.mxu0 %v364
        %366 = vmatprep.subr.mxu0 0.0
        %367 = vmatpush1.msra.mxu0 0.0
        %368 = vmatprep.subr.mxu0 0.0
        %369 = vmatpush1.msra.mxu0 0.0
        %370 = vmatprep.subr.mxu0 0.0
        %371 = vmatpush1.msra.mxu0 0.0
        %372 = vmatprep.subr.mxu0 0.0
        %373 = vmatpush1.msra.mxu0 0.0
        %374 = vmatprep.subr.mxu0 0.0
        %375 = vmatpush1.msra.mxu0 0.0
        %376 = vmatprep.subr.mxu0 0.0
        %377 = vmatpush1.msra.mxu0 0.0
        %378 = vmatprep.subr.mxu0 0.0
        %379 = vmatpush1.msra.mxu0 0.0
        %380 = vmatprep.subr.mxu0 0.0
        %381 = vmatpush1.msra.mxu0 0.0
        %382 = vmatprep.subr.mxu0 0.0
        %383 = vmatpush1.msra.mxu0 0.0
        %384 = vmatprep.subr.mxu0 0.0
        %385 = vmatpush1.msra.mxu0 0.0
        %386 = vmatprep.subr.mxu0 0.0
        %387 = vmatpush1.msra.mxu0 0.0
        %388 = vmatprep.subr.mxu0 0.0
        %389 = vmatpush1.msra.mxu0 0.0
        %390 = vmatprep.subr.mxu0 0.0
        %391 = vmatpush1.msra.mxu0 0.0
        %392 = vmatprep.subr.mxu0 0.0
        %393 = vmatpush1.msra.mxu0 0.0
        %394 = vmatprep.subr.mxu0 0.0
        %395 = vmatpush1.msra.mxu0 0.0
        %396 = vmatprep.subr.mxu0 0.0
        %397 = vmatpush1.msra.mxu0 0.0
        %398 = vmatprep.subr.mxu0 0.0
        %399 = vmatpush1.msra.mxu0 0.0
        %400 = vmatprep.subr.mxu0 0.0
        %401 = vmatpush1.msra.mxu0 0.0
        %402 = vmatprep.subr.mxu0 0.0
        %403 = vmatpush1.msra.mxu0 0.0
        %404 = vmatprep.subr.mxu0 0.0
        %405 = vmatpush1.msra.mxu0 0.0
        %406 = vmatprep.subr.mxu0 0.0
        %407 = vmatpush1.msra.mxu0 0.0
        %408 = vmatprep.subr.mxu0 0.0
        %409 = vmatpush1.msra.mxu0 0.0
        %410 = vmatprep.subr.mxu0 0.0
        %411 = vmatpush1.msra.mxu0 0.0
        %412 = vmatprep.subr.mxu0 0.0
        %413 = vmatpush1.msra.mxu0 0.0
        %414 = vmatprep.subr.mxu0 0.0
        %415 = vmatpush1.msra.mxu0 0.0
        %416 = vmatprep.subr.mxu0 0.0
        %417 = vmatpush1.msra.mxu0 0.0
        %418 = vmatprep.subr.mxu0 0.0
        %419 = vmatpush1.msra.mxu0 0.0
        %420 = vmatprep.subr.mxu0 0.0
        %421 = vmatpush1.msra.mxu0 0.0
        %422 = vmatprep.subr.mxu0 0.0
        %423 = vmatpush1.msra.mxu0 0.0
        %424 = vmatprep.subr.mxu0 0.0
        %425 = vmatpush1.msra.mxu0 0.0
        %426 = vmatprep.subr.mxu0 0.0
        %427 = vmatpush1.msra.mxu0 0.0
        %428 = vmatprep.mubr.f32.mxu0 0.0
        %v429 = vand.u32 %v204, 4294901760
        %v430 = vsub.f32 %v204, %v429
        %431 = vmatmul.mubr.f32.gmra.mrb[0].mxu0 %v430
        %v432 = vpop.f32.mrb[0].mxu0
        %v433 = vadd.f32 %v359, %v432
        %v434 = vpop.f32.mrb[0].mxu0
        %435 = vdwg.mxu0
        %436 = vmatprep.subr.mxu0 0.0
        %v437 = vand.u32 %v208, 4294901760
        %438 = vmatpush1.msra.mxu0 %v437
        %439 = vmatprep.subr.mxu0 0.0
        %440 = vmatpush1.msra.mxu0 0.0
        %441 = vmatprep.subr.mxu0 0.0
        %442 = vmatpush1.msra.mxu0 0.0
        %443 = vmatprep.subr.mxu0 0.0
        %444 = vmatpush1.msra.mxu0 0.0
        %445 = vmatprep.subr.mxu0 0.0
        %446 = vmatpush1.msra.mxu0 0.0
        %447 = vmatprep.subr.mxu0 0.0
        %448 = vmatpush1.msra.mxu0 0.0
        %449 = vmatprep.subr.mxu0 0.0
        %450 = vmatpush1.msra.mxu0 0.0
        %451 = vmatprep.subr.mxu0 0.0
        %452 = vmatpush1.msra.mxu0 0.0
        %453 = vmatprep.subr.mxu0 0.0
        %454 = vmatpush1.msra.mxu0 0.0
        %455 = vmatprep.subr.mxu0 0.0
        %456 = vmatpush1.msra.mxu0 0.0
        %457 = vmatprep.subr.mxu0 0.0
        %458 = vmatpush1.msra.mxu0 0.0
        %459 = vmatprep.subr.mxu0 0.0
        %460 = vmatpush1.msra.mxu0 0.0
        %461 = vmatprep.subr.mxu0 0.0
        %462 = vmatpush1.msra.mxu0 0.0
        %463 = vmatprep.subr.mxu0 0.0
        %464 = vmatpush1.msra.mxu0 0.0
        %465 = vmatprep.subr.mxu0 0.0
        %466 = vmatpush1.msra.mxu0 0.0
        %467 = vmatprep.subr.mxu0 0.0
        %468 = vmatpush1.msra.mxu0 0.0
        %469 = vmatprep.subr.mxu0 0.0
        %470 = vmatpush1.msra.mxu0 0.0
        %471 = vmatprep.subr.mxu0 0.0
        %472 = vmatpush1.msra.mxu0 0.0
        %473 = vmatprep.subr.mxu0 0.0
        %474 = vmatpush1.msra.mxu0 0.0
        %475 = vmatprep.subr.mxu0 0.0
        %476 = vmatpush1.msra.mxu0 0.0
        %477 = vmatprep.subr.mxu0 0.0
        %478 = vmatpush1.msra.mxu0 0.0
        %479 = vmatprep.subr.mxu0 0.0
        %480 = vmatpush1.msra.mxu0 0.0
        %481 = vmatprep.subr.mxu0 0.0
        %482 = vmatpush1.msra.mxu0 0.0
        %483 = vmatprep.subr.mxu0 0.0
        %484 = vmatpush1.msra.mxu0 0.0
        %485 = vmatprep.subr.mxu0 0.0
        %486 = vmatpush1.msra.mxu0 0.0
        %487 = vmatprep.subr.mxu0 0.0
        %488 = vmatpush1.msra.mxu0 0.0
        %489 = vmatprep.subr.mxu0 0.0
        %490 = vmatpush1.msra.mxu0 0.0
        %491 = vmatprep.subr.mxu0 0.0
        %492 = vmatpush1.msra.mxu0 0.0
        %493 = vmatprep.subr.mxu0 0.0
        %494 = vmatpush1.msra.mxu0 0.0
        %495 = vmatprep.subr.mxu0 0.0
        %496 = vmatpush1.msra.mxu0 0.0
        %497 = vmatprep.subr.mxu0 0.0
        %498 = vmatpush1.msra.mxu0 0.0
        %499 = vmatprep.subr.mxu0 0.0
        %500 = vmatpush1.msra.mxu0 0.0
        %501 = vmatprep.mubr.f32.mxu0 0.0
        %v502 = vand.u32 %v204, 4294901760
        %v503 = vsub.f32 %v204, %v502
        %v504 = vand.u32 %v503, 4294901760
        %505 = vmatmul.mubr.f32.gmra.mrb[0].mxu0 %v504
        %v506 = vpop.f32.mrb[0].mxu0
        %v507 = vadd.f32 %v433, %v506
        %v508 = vpop.f32.mrb[0].mxu0
        %509 = vdwg.mxu0
        %510 = vmatprep.subr.mxu0 0.0
        %v511 = vand.u32 %v208, 4294901760
        %v512 = vsub.f32 %v208, %v511
        %v513 = vand.u32 %v512, 4294901760
        %514 = vmatpush1.msra.mxu0 %v513
        %515 = vmatprep.subr.mxu0 0.0
        %516 = vmatpush1.msra.mxu0 0.0
        %517 = vmatprep.subr.mxu0 0.0
        %518 = vmatpush1.msra.mxu0 0.0
        %519 = vmatprep.subr.mxu0 0.0
        %520 = vmatpush1.msra.mxu0 0.0
        %521 = vmatprep.subr.mxu0 0.0
        %522 = vmatpush1.msra.mxu0 0.0
        %523 = vmatprep.subr.mxu0 0.0
        %524 = vmatpush1.msra.mxu0 0.0
        %525 = vmatprep.subr.mxu0 0.0
        %526 = vmatpush1.msra.mxu0 0.0
        %527 = vmatprep.subr.mxu0 0.0
        %528 = vmatpush1.msra.mxu0 0.0
        %529 = vmatprep.subr.mxu0 0.0
        %530 = vmatpush1.msra.mxu0 0.0
        %531 = vmatprep.subr.mxu0 0.0
        %532 = vmatpush1.msra.mxu0 0.0
        %533 = vmatprep.subr.mxu0 0.0
        %534 = vmatpush1.msra.mxu0 0.0
        %535 = vmatprep.subr.mxu0 0.0
        %536 = vmatpush1.msra.mxu0 0.0
        %537 = vmatprep.subr.mxu0 0.0
        %538 = vmatpush1.msra.mxu0 0.0
        %539 = vmatprep.subr.mxu0 0.0
        %540 = vmatpush1.msra.mxu0 0.0
        %541 = vmatprep.subr.mxu0 0.0
        %542 = vmatpush1.msra.mxu0 0.0
        %543 = vmatprep.subr.mxu0 0.0
        %544 = vmatpush1.msra.mxu0 0.0
        %545 = vmatprep.subr.mxu0 0.0
        %546 = vmatpush1.msra.mxu0 0.0
        %547 = vmatprep.subr.mxu0 0.0
        %548 = vmatpush1.msra.mxu0 0.0
        %549 = vmatprep.subr.mxu0 0.0
        %550 = vmatpush1.msra.mxu0 0.0
        %551 = vmatprep.subr.mxu0 0.0
        %552 = vmatpush1.msra.mxu0 0.0
        %553 = vmatprep.subr.mxu0 0.0
        %554 = vmatpush1.msra.mxu0 0.0
        %555 = vmatprep.subr.mxu0 0.0
        %556 = vmatpush1.msra.mxu0 0.0
        %557 = vmatprep.subr.mxu0 0.0
        %558 = vmatpush1.msra.mxu0 0.0
        %559 = vmatprep.subr.mxu0 0.0
        %560 = vmatpush1.msra.mxu0 0.0
        %561 = vmatprep.subr.mxu0 0.0
        %562 = vmatpush1.msra.mxu0 0.0
        %563 = vmatprep.subr.mxu0 0.0
        %564 = vmatpush1.msra.mxu0 0.0
        %565 = vmatprep.subr.mxu0 0.0
        %566 = vmatpush1.msra.mxu0 0.0
        %567 = vmatprep.subr.mxu0 0.0
        %568 = vmatpush1.msra.mxu0 0.0
        %569 = vmatprep.subr.mxu0 0.0
        %570 = vmatpush1.msra.mxu0 0.0
        %571 = vmatprep.subr.mxu0 0.0
        %572 = vmatpush1.msra.mxu0 0.0
        %573 = vmatprep.subr.mxu0 0.0
        %574 = vmatpush1.msra.mxu0 0.0
        %575 = vmatprep.subr.mxu0 0.0
        %576 = vmatpush1.msra.mxu0 0.0
        %577 = vmatprep.mubr.f32.mxu0 0.0
        %v578 = vand.u32 %v204, 4294901760
        %579 = vmatmul.mubr.f32.gmra.mrb[0].mxu0 %v578
        %v580 = vpop.f32.mrb[0].mxu0
        %v581 = vadd.f32 %v507, %v580
        %v582 = vpop.f32.mrb[0].mxu0
        %583 = vdwg.mxu0
        %584 = vmatprep.subr.mxu0 0.0
        %v585 = vand.u32 %v208, 4294901760
        %586 = vmatpush1.msra.mxu0 %v585
        %587 = vmatprep.subr.mxu0 0.0
        %588 = vmatpush1.msra.mxu0 0.0
        %589 = vmatprep.subr.mxu0 0.0
        %590 = vmatpush1.msra.mxu0 0.0
        %591 = vmatprep.subr.mxu0 0.0
        %592 = vmatpush1.msra.mxu0 0.0
        %593 = vmatprep.subr.mxu0 0.0
        %594 = vmatpush1.msra.mxu0 0.0
        %595 = vmatprep.subr.mxu0 0.0
        %596 = vmatpush1.msra.mxu0 0.0
        %597 = vmatprep.subr.mxu0 0.0
        %598 = vmatpush1.msra.mxu0 0.0
        %599 = vmatprep.subr.mxu0 0.0
        %600 = vmatpush1.msra.mxu0 0.0
        %601 = vmatprep.subr.mxu0 0.0
        %602 = vmatpush1.msra.mxu0 0.0
        %603 = vmatprep.subr.mxu0 0.0
        %604 = vmatpush1.msra.mxu0 0.0
        %605 = vmatprep.subr.mxu0 0.0
        %606 = vmatpush1.msra.mxu0 0.0
        %607 = vmatprep.subr.mxu0 0.0
        %608 = vmatpush1.msra.mxu0 0.0
        %609 = vmatprep.subr.mxu0 0.0
        %610 = vmatpush1.msra.mxu0 0.0
        %611 = vmatprep.subr.mxu0 0.0
        %612 = vmatpush1.msra.mxu0 0.0
        %613 = vmatprep.subr.mxu0 0.0
        %614 = vmatpush1.msra.mxu0 0.0
        %615 = vmatprep.subr.mxu0 0.0
        %616 = vmatpush1.msra.mxu0 0.0
        %617 = vmatprep.subr.mxu0 0.0
        %618 = vmatpush1.msra.mxu0 0.0
        %619 = vmatprep.subr.mxu0 0.0
        %620 = vmatpush1.msra.mxu0 0.0
        %621 = vmatprep.subr.mxu0 0.0
        %622 = vmatpush1.msra.mxu0 0.0
        %623 = vmatprep.subr.mxu0 0.0
        %624 = vmatpush1.msra.mxu0 0.0
        %625 = vmatprep.subr.mxu0 0.0
        %626 = vmatpush1.msra.mxu0 0.0
        %627 = vmatprep.subr.mxu0 0.0
        %628 = vmatpush1.msra.mxu0 0.0
        %629 = vmatprep.subr.mxu0 0.0
        %630 = vmatpush1.msra.mxu0 0.0
        %631 = vmatprep.subr.mxu0 0.0
        %632 = vmatpush1.msra.mxu0 0.0
        %633 = vmatprep.subr.mxu0 0.0
        %634 = vmatpush1.msra.mxu0 0.0
        %635 = vmatprep.subr.mxu0 0.0
        %636 = vmatpush1.msra.mxu0 0.0
        %637 = vmatprep.subr.mxu0 0.0
        %638 = vmatpush1.msra.mxu0 0.0
        %639 = vmatprep.subr.mxu0 0.0
        %640 = vmatpush1.msra.mxu0 0.0
        %641 = vmatprep.subr.mxu0 0.0
        %642 = vmatpush1.msra.mxu0 0.0
        %643 = vmatprep.subr.mxu0 0.0
        %644 = vmatpush1.msra.mxu0 0.0
        %645 = vmatprep.subr.mxu0 0.0
        %646 = vmatpush1.msra.mxu0 0.0
        %647 = vmatprep.subr.mxu0 0.0
        %648 = vmatpush1.msra.mxu0 0.0
        %649 = vmatprep.mubr.f32.mxu0 0.0
        %v650 = vand.u32 %v204, 4294901760
        %651 = vmatmul.mubr.f32.gmra.mrb[0].mxu0 %v650
        %v652 = vpop.f32.mrb[0].mxu0
        %v653 = vadd.f32 %v581, %v652
        %v654 = vpop.f32.mrb[0].mxu0
        %655 = vdwg.mxu0
        %v656 = vmax.f32 %v653, 0.0
        %657 = vst [vmem:[%s185] sm:$0xff] %v656
        %s658 = sand.u32 %s109, 1
        %s659 = scalar_lea.sflag [#allocation3], %s658
        %s660 = sand.u32 %s109, 1
        %s661 = smul.addr %s660, 8
        %s662 = scalar_lea.vmem [#allocation2], %s661
        // Predicated region
        $region33: #{tpu_custom_call.1} parent=31 // pred_check
          %p663 = pneg %p119
        $region34: #{tpu_custom_call.1} parent=31 // pred_check_branch
          %665 = sbr.rel (%p663) target = $region36
        $region35: #{tpu_custom_call.1} parent=31 // pred_region
          %s667 = ssub.s32 128, 128
          %668 = vsyncadd %s659, %s667
          %s669 = smul.addr %s21, 2
          %s670 = sadd.s32 %s22, %s669
          %s671 = smul.addr %s670, 128
          %s672 = scalar_lea.hbm %s3, %s671
          %s674 = sshll.u32 %s662, 4
          %s675 = int_to_ptr.vmem [resolvable:$true] %s674
          %677 = dma.vmem_to_hbm [thread:$0]  %s675, 128, %s672, %s659
        $region36: #{tpu_custom_call.1} parent=31 // pred_fallthru
          _
      $region32: #{tpu_custom_call.1} parent=5 // pred_fallthru
        _
      %p678 = scmp.le.s32.totalorder 2, %s12
      // Predicated region
      $region37: #{tpu_custom_call.1} parent=5 // pred_check
        %p679 = pneg %p678
      $region38: #{tpu_custom_call.1} parent=5 // pred_check_branch
        %681 = sbr.rel (%p679) target = $region40
      $region39: #{tpu_custom_call.1} parent=5 // pred_region
        %s682 = ssub.s32 %s12, 2
        // Predicated region
        $region41: #{tpu_custom_call.1} parent=39 // pred_check
          %p683 = pneg %p125
        $region42: #{tpu_custom_call.1} parent=39 // pred_check_branch
          %685 = sbr.rel (%p683) target = $region44
        $region43: #{tpu_custom_call.1} parent=39 // pred_region
          %s686 = sand.u32 %s110, 1
          %s687 = scalar_lea.sflag [#allocation3], %s686
          %s688 = sand.u32 %s110, 1
          %s689 = smul.addr %s688, 8
          %s690 = scalar_lea.vmem [#allocation2], %s689
          %691 = dma.done %s687, 128
        $region44: #{tpu_custom_call.1} parent=39 // pred_fallthru
          _
      $region40: #{tpu_custom_call.1} parent=5 // pred_fallthru
        _
    $region6: #{tpu_custom_call.1} parent=1 // loop_footer
      %s16 = sadd.s32 1, %s12
    $region7: #{tpu_custom_call.1} parent=1 // loop_footer_branch
      %11 = sbr.rel target = $region3
    $region8: #{tpu_custom_call.1} parent=1 // loop_exit
      _
    %692 = vsyncpa [#allocation3], 1
    %s693 = scalar_lea.sflag [#allocation3], 1
    %694 = vsyncpa %s693, 1

</llo_original>
